<compile_context>
chip_gen: v5e
topology: v5e:2x2
jax: 0.10.0
libtpu: 0.0.40
codegen_flags: <defaults>
</compile_context>

<pallas_src>
from functools import partial

import jax
import jax.numpy as jnp
import numpy as np
from jax.experimental import pallas as pl
from jax.experimental.pallas import tpu as pltpu


def _round_up(a: int, b: int) -> int:
    return ((a + b - 1) // b) * b


# --------------------------------------------------------------------------
# Pass 1: per-graph statistics -> [scale | offset]  (sequential over tiles)
# --------------------------------------------------------------------------
def stats_kernel(bid_ref, x_ref, invcnt_ref, ms_ref, w_ref, b_ref,   # inputs
                 stats_ref,                                          # output [Gp, 2D]
                 acc_ref,                                            # scratch [Gp, 2D]
                 *, num_rows, num_graphs):
    t = pl.program_id(0)
    tn, d = x_ref.shape
    gp = acc_ref.shape[0]

    @pl.when(t == 0)
    def _init():
        acc_ref[...] = jnp.zeros_like(acc_ref)

    # Feed the MXU in bf16 when x is bf16 (one-hot is exactly representable);
    # otherwise stay in f32.  Accumulation is always f32.
    mxu_dtype = jnp.bfloat16 if x_ref.dtype == jnp.bfloat16 else jnp.float32

    x = x_ref[...]                                          # [TN, D]
    if num_rows % tn != 0:
        # Ragged last tile: zero out-of-bounds rows so stale VMEM garbage
        # never reaches the MXU (a garbage bid could otherwise pick it up).
        rows = t * tn + jax.lax.broadcasted_iota(jnp.int32, (tn, 1), 0)
        x = jnp.where(rows < num_rows, x, jnp.zeros_like(x))

    xf = x.astype(mxu_dtype)
    rhs = jnp.concatenate([xf, xf * xf], axis=-1)           # [TN, 2D]

    bid = bid_ref[...]                                      # [1, TN] int32
    onehot = (jax.lax.broadcasted_iota(jnp.int32, (gp, tn), 0)
              == bid).astype(mxu_dtype)                     # [Gp, TN]

    # Single fused MXU push per tile: sums of x and x*x per graph.
    acc_ref[...] += jnp.dot(onehot, rhs, preferred_element_type=jnp.float32)

    @pl.when(t == pl.num_programs(0) - 1)
    def _finalize():
        acc = acc_ref[...]                                  # [Gp, 2D] f32
        inv = invcnt_ref[...]                               # [Gp, 1]  f32
        mean = acc[:, :d] * inv                             # [Gp, D]
        ex2 = acc[:, d:] * inv                              # [Gp, D]
        ms = ms_ref[...]                                    # [1, D] f32
        w = w_ref[...]
        b = b_ref[...]
        # Var(x - mean*ms) over a graph == E[x^2] - (2*ms - ms^2) * mean^2.
        # (One streaming pass; f32 accumulation.  For strongly non-centered
        # data a centered second pass would be more robust.)
        var = jnp.maximum(ex2 - (2.0 * ms - ms * ms) * (mean * mean), 0.0)
        scale = w * jax.lax.rsqrt(var + 1e-6)               # [Gp, D]
        offset = b - (mean * ms) * scale                    # bias folded in
        # Zero padded graph rows (hygiene; no real node maps to them).
        gvalid = jax.lax.broadcasted_iota(jnp.int32, (gp, 1), 0) < num_graphs
        scale = jnp.where(gvalid, scale, 0.0)
        offset = jnp.where(gvalid, offset, 0.0)
        stats_ref[...] = jnp.concatenate([scale, offset], axis=-1)


# --------------------------------------------------------------------------
# Pass 2: normalize — one scatter matmul + one FMA (parallel over tiles)
# --------------------------------------------------------------------------
def normalize_kernel(bid_ref, x_ref, stats_ref, o_ref):
    tn, d = x_ref.shape
    gp = stats_ref.shape[0]

    bid = bid_ref[...]                                      # [TN, 1] int32
    onehot = (jax.lax.broadcasted_iota(jnp.int32, (tn, gp), 1)
              == bid).astype(jnp.float32)                   # [TN, Gp]

    nodes = jnp.dot(onehot, stats_ref[...],
                    preferred_element_type=jnp.float32)     # [TN, 2D]
    x = x_ref[...].astype(jnp.float32)
    out = x * nodes[:, :d] + nodes[:, d:]
    o_ref[...] = out.astype(o_ref.dtype)


# --------------------------------------------------------------------------
# Wrapper
# --------------------------------------------------------------------------
def graph_norm(x, batch, weight, bias, mean_scale, num_graphs, *, row_tile=512):
    """x: [N, D], batch: [N] int graph ids in [0, num_graphs)."""
    assert row_tile % 128 == 0
    N, D = x.shape
    dtype = x.dtype
    G = int(num_graphs)

    Gp = _round_up(max(G, 1), 8)                 # sublane-aligned graph axis
    TN = N if N <= row_tile else row_tile        # row tile (mult of 128 or == N)
    n_tiles = pl.cdiv(N, TN)

    batch_i = batch.astype(jnp.int32)
    bid_row = batch_i.reshape(1, N)              # lane-dense for the stats pass
    bid_col = batch_i.reshape(N, 1)              # column for the normalize pass

    # Per-graph counts: tiny scatter-add outside the kernel; padded/empty
    # graphs guarded with max(count, 1).
    cnt = jnp.zeros((Gp,), jnp.float32).at[batch_i].add(1.0)
    inv_cnt = (1.0 / jnp.maximum(cnt, 1.0)).reshape(Gp, 1)

    # Parameters in f32 (avoid silent downcast when x is bf16).
    w = weight.astype(jnp.float32).reshape(1, D)
    b = bias.astype(jnp.float32).reshape(1, D)
    ms = mean_scale.astype(jnp.float32).reshape(1, D)

    itemsize = np.dtype(dtype).itemsize
    est = (4 * TN * D * max(itemsize, 4)         # double-buffered x / out tiles
           + 4 * Gp * 2 * D * 4                  # resident acc + stats
           + 8 * TN * 4)                         # bid tiles
    vmem_limit = int(min(max(2 * est, 32 * 1024 * 1024), 64 * 1024 * 1024))

    # ---- pass 1: per-graph [scale | offset] -------------------------------
    stats = pl.pallas_call(
        partial(stats_kernel, num_rows=N, num_graphs=G),
        out_shape=jax.ShapeDtypeStruct((Gp, 2 * D), jnp.float32),
        grid_spec=pltpu.PrefetchScalarGridSpec(
            num_scalar_prefetch=0,
            grid=(n_tiles,),
            in_specs=[
                pl.BlockSpec((1, TN), lambda t: (0, t)),     # bid (lane-dense)
                pl.BlockSpec((TN, D), lambda t: (t, 0)),     # x
                pl.BlockSpec((Gp, 1), lambda t: (0, 0)),     # 1 / count
                pl.BlockSpec((1, D), lambda t: (0, 0)),      # mean_scale
                pl.BlockSpec((1, D), lambda t: (0, 0)),      # weight
                pl.BlockSpec((1, D), lambda t: (0, 0)),      # bias
            ],
            out_specs=pl.BlockSpec((Gp, 2 * D), lambda t: (0, 0)),
            scratch_shapes=[pltpu.VMEM((Gp, 2 * D), jnp.float32)],
        ),
        compiler_params=pltpu.CompilerParams(
            dimension_semantics=("arbitrary",),
            vmem_limit_bytes=vmem_limit),
    )(bid_row, x, inv_cnt, ms, w, b)

    # ---- pass 2: out = x * scale + offset ---------------------------------
    out = pl.pallas_call(
        normalize_kernel,
        out_shape=jax.ShapeDtypeStruct((N, D), dtype),
        grid_spec=pltpu.PrefetchScalarGridSpec(
            num_scalar_prefetch=0,
            grid=(n_tiles,),
            in_specs=[
                pl.BlockSpec((TN, 1), lambda t: (t, 0)),     # bid
                pl.BlockSpec((TN, D), lambda t: (t, 0)),     # x
                pl.BlockSpec((Gp, 2 * D), lambda t: (0, 0)), # [scale | offset]
            ],
            out_specs=pl.BlockSpec((TN, D), lambda t: (t, 0)),
        ),
        compiler_params=pltpu.CompilerParams(
            dimension_semantics=("parallel",),
            vmem_limit_bytes=vmem_limit),
    )(bid_col, x, stats)

    return out


# --------------------------------------------------------------------------
# Pure-numpy reference matching the PyTorch module semantics.
# --------------------------------------------------------------------------
def graph_norm_ref(x, batch, weight, bias, mean_scale, num_graphs):
    x = np.asarray(x, dtype=np.float64)
    batch = np.asarray(batch)
    out = np.empty_like(x)
    w = np.asarray(weight, dtype=np.float64)
    b = np.asarray(bias, dtype=np.float64)
    ms = np.asarray(mean_scale, dtype=np.float64)
    for g in range(num_graphs):
        idx = batch == g
        xg = x[idx]
        mean = xg.mean(axis=0, keepdims=True)
        sub = xg - mean * ms
        std = np.sqrt((sub ** 2).mean(axis=0, keepdims=True) + 1e-6)
        out[idx] = w * sub / std + b
    return out


def _run_case(key, counts, latent_dim, row_tile):
    num_graphs = len(counts)
    N = sum(counts)
    batch_np = np.repeat(np.arange(num_graphs, dtype=np.int32), counts)
    batch = jnp.asarray(batch_np)

    kx, kw, kb, km = jax.random.split(key, 4)
    x = jax.random.normal(kx, (N, latent_dim), dtype=jnp.float32)
    weight = jnp.ones((latent_dim,), jnp.float32) + 0.1 * jax.random.normal(
        kw, (latent_dim,), jnp.float32)
    bias = jnp.zeros((latent_dim,), jnp.float32) + 0.1 * jax.random.normal(
        kb, (latent_dim,), jnp.float32)
    mean_scale = jnp.ones((latent_dim,), jnp.float32) + 0.1 * jax.random.normal(
        km, (latent_dim,), jnp.float32)

    out = graph_norm(x, batch, weight, bias, mean_scale, num_graphs,
                     row_tile=row_tile)
    out = jax.block_until_ready(out)

    ref = graph_norm_ref(np.asarray(x), batch_np, np.asarray(weight),
                         np.asarray(bias), np.asarray(mean_scale), num_graphs)
    np.testing.assert_allclose(np.asarray(out), ref, rtol=2e-4, atol=2e-4)


if __name__ == "__main__":
    key = jax.random.PRNGKey(0)
    k1, k2 = jax.random.split(key)

    # Small case: 3 graphs, 16 nodes, D=32 (single row tile).
    _run_case(k1, counts=[5, 6, 5], latent_dim=32, row_tile=512)

    # Multi-tile case with a ragged last row tile (exercises in-kernel row
    # masking and partial output blocks): 5 graphs, 300 nodes, tile=128.
    _run_case(k2, counts=[70, 50, 90, 60, 30], latent_dim=32, row_tile=128)

    print("KERNEL_OK")
</pallas_src>

<mosaic_0001>
module attributes {stable_mosaic.version = 11 : i64} {
  func.func @stats_kernel(%arg0: i32, %arg1: memref<1x16xi32, #tpu.memory_space<vmem>>, %arg2: memref<16x32xf32, #tpu.memory_space<vmem>>, %arg3: memref<8x1xf32, #tpu.memory_space<vmem>>, %arg4: memref<1x32xf32, #tpu.memory_space<vmem>>, %arg5: memref<1x32xf32, #tpu.memory_space<vmem>>, %arg6: memref<1x32xf32, #tpu.memory_space<vmem>>, %arg7: memref<8x64xf32, #tpu.memory_space<vmem>>, %arg8: memref<8x64xf32, #tpu.memory_space<vmem>>) attributes {dimension_semantics = [#tpu.dimension_semantics<arbitrary>], iteration_bounds = array<i64: 1>, scalar_prefetch = 0 : i64, scratch_operands = 1 : i64, tpu.core_type = #tpu.core_type<tc>, window_params = [{transform_indices = @transform_0, window_bounds = array<i64: 1, 16>}, {transform_indices = @transform_1, window_bounds = array<i64: 16, 32>}, {pipeline_mode = #tpu.pipeline_mode<synchronous>, transform_indices = @transform_2, window_bounds = array<i64: 8, 1>}, {pipeline_mode = #tpu.pipeline_mode<synchronous>, transform_indices = @transform_3, window_bounds = array<i64: 1, 32>}, {pipeline_mode = #tpu.pipeline_mode<synchronous>, transform_indices = @transform_4, window_bounds = array<i64: 1, 32>}, {pipeline_mode = #tpu.pipeline_mode<synchronous>, transform_indices = @transform_5, window_bounds = array<i64: 1, 32>}, {pipeline_mode = #tpu.pipeline_mode<synchronous>, transform_indices = @transform_6, window_bounds = array<i64: 8, 64>}]} {
    %c0_i32 = arith.constant 0 : i32
    %0 = arith.cmpi eq, %arg0, %c0_i32 : i32
    %1 = arith.extui %0 : i1 to i32
    %c0_i32_0 = arith.constant 0 : i32
    %2 = arith.cmpi ne, %1, %c0_i32_0 : i32
    scf.if %2 {
      %cst_10 = arith.constant 0.000000e+00 : f32
      %19 = vector.broadcast %cst_10 : f32 to vector<8x64xf32>
      %c0_11 = arith.constant 0 : index
      %c0_12 = arith.constant 0 : index
      %20 = vector.load %arg8[%c0_11, %c0_12] : memref<8x64xf32, #tpu.memory_space<vmem>>, vector<8x64xf32>
      tpu.vector_store %arg8[%c0_11, %c0_12], %19 {strides = array<i32>} : memref<8x64xf32, #tpu.memory_space<vmem>>, vector<8x64xf32>,
    } else {
    }
    %c0 = arith.constant 0 : index
    %c0_1 = arith.constant 0 : index
    %3 = vector.load %arg2[%c0, %c0_1] : memref<16x32xf32, #tpu.memory_space<vmem>>, vector<16x32xf32>
    %4 = arith.mulf %3, %3 : vector<16x32xf32>
    %5 = tpu.concatenate %3, %4 in 1 : vector<16x32xf32>, vector<16x32xf32> -> vector<16x64xf32>
    %c0_2 = arith.constant 0 : index
    %c0_3 = arith.constant 0 : index
    %6 = vector.load %arg1[%c0_2, %c0_3] : memref<1x16xi32, #tpu.memory_space<vmem>>, vector<1x16xi32>
    %7 = tpu.iota {dimensions = array<i32: 0>} : vector<8x16xi32>
    %8 = vector.broadcast %6 : vector<1x16xi32> to vector<8x16xi32>
    %9 = arith.cmpi eq, %7, %8 : vector<8x16xi32>
    %10 = arith.extui %9 : vector<8x16xi1> to vector<8x16xi32>
    %11 = arith.sitofp %10 : vector<8x16xi32> to vector<8x16xf32>
    %c0_4 = arith.constant 0 : index
    %c0_5 = arith.constant 0 : index
    %12 = vector.load %arg8[%c0_4, %c0_5] : memref<8x64xf32, #tpu.memory_space<vmem>>, vector<8x64xf32>
    %cst = arith.constant dense<0.000000e+00> : vector<8x64xf32>
    %13 = tpu.matmul %11, %5, %cst {dimension_numbers = #tpu.dot_dimension_numbers<[1], [0], [0], [1], [0, 0, 1, 1], [], []>} : vector<8x16xf32>, vector<16x64xf32>, vector<8x64xf32> -> vector<8x64xf32>
    %14 = arith.addf %12, %13 : vector<8x64xf32>
    %c0_6 = arith.constant 0 : index
    %c0_7 = arith.constant 0 : index
    %15 = vector.load %arg8[%c0_6, %c0_7] : memref<8x64xf32, #tpu.memory_space<vmem>>, vector<8x64xf32>
    tpu.vector_store %arg8[%c0_6, %c0_7], %14 {strides = array<i32>} : memref<8x64xf32, #tpu.memory_space<vmem>>, vector<8x64xf32>,
    %c0_i32_8 = arith.constant 0 : i32
    %16 = arith.cmpi eq, %arg0, %c0_i32_8 : i32
    %17 = arith.extui %16 : i1 to i32
    %c0_i32_9 = arith.constant 0 : i32
    %18 = arith.cmpi ne, %17, %c0_i32_9 : i32
    scf.if %18 {
      %c0_10 = arith.constant 0 : index
      %c0_11 = arith.constant 0 : index
      %19 = vector.load %arg8[%c0_10, %c0_11] : memref<8x64xf32, #tpu.memory_space<vmem>>, vector<8x64xf32>
      %c0_12 = arith.constant 0 : index
      %c0_13 = arith.constant 0 : index
      %20 = vector.load %arg3[%c0_12, %c0_13] : memref<8x1xf32, #tpu.memory_space<vmem>>, vector<8x1xf32>
      %21 = vector.extract_strided_slice %19 {offsets = [0, 0], sizes = [8, 32], strides = [1, 1]} : vector<8x64xf32> to vector<8x32xf32>
      %22 = vector.broadcast %20 : vector<8x1xf32> to vector<8x32xf32>
      %23 = arith.mulf %21, %22 : vector<8x32xf32>
      %24 = vector.extract_strided_slice %19 {offsets = [0, 32], sizes = [8, 32], strides = [1, 1]} : vector<8x64xf32> to vector<8x32xf32>
      %25 = vector.broadcast %20 : vector<8x1xf32> to vector<8x32xf32>
      %26 = arith.mulf %24, %25 : vector<8x32xf32>
      %c0_14 = arith.constant 0 : index
      %c0_15 = arith.constant 0 : index
      %27 = vector.load %arg4[%c0_14, %c0_15] : memref<1x32xf32, #tpu.memory_space<vmem>>, vector<1x32xf32>
      %c0_16 = arith.constant 0 : index
      %c0_17 = arith.constant 0 : index
      %28 = vector.load %arg5[%c0_16, %c0_17] : memref<1x32xf32, #tpu.memory_space<vmem>>, vector<1x32xf32>
      %c0_18 = arith.constant 0 : index
      %c0_19 = arith.constant 0 : index
      %29 = vector.load %arg6[%c0_18, %c0_19] : memref<1x32xf32, #tpu.memory_space<vmem>>, vector<1x32xf32>
      %cst_20 = arith.constant 2.000000e+00 : f32
      %30 = vector.broadcast %cst_20 : f32 to vector<1x32xf32>
      %31 = arith.mulf %30, %27 : vector<1x32xf32>
      %32 = arith.mulf %27, %27 : vector<1x32xf32>
      %33 = arith.subf %31, %32 : vector<1x32xf32>
      %34 = arith.mulf %23, %23 : vector<8x32xf32>
      %35 = vector.broadcast %33 : vector<1x32xf32> to vector<8x32xf32>
      %36 = arith.mulf %35, %34 : vector<8x32xf32>
      %37 = arith.subf %26, %36 : vector<8x32xf32>
      %cst_21 = arith.constant 0.000000e+00 : f32
      %38 = vector.broadcast %cst_21 : f32 to vector<8x32xf32>
      %39 = arith.maximumf %37, %38 : vector<8x32xf32>
      %cst_22 = arith.constant 9.99999997E-7 : f32
      %40 = vector.broadcast %cst_22 : f32 to vector<8x32xf32>
      %41 = arith.addf %39, %40 : vector<8x32xf32>
      %42 = math.rsqrt %41 : vector<8x32xf32>
      %43 = vector.broadcast %28 : vector<1x32xf32> to vector<8x32xf32>
      %44 = arith.mulf %43, %42 : vector<8x32xf32>
      %45 = vector.broadcast %27 : vector<1x32xf32> to vector<8x32xf32>
      %46 = arith.mulf %23, %45 : vector<8x32xf32>
      %47 = arith.mulf %46, %44 : vector<8x32xf32>
      %48 = vector.broadcast %29 : vector<1x32xf32> to vector<8x32xf32>
      %49 = arith.subf %48, %47 : vector<8x32xf32>
      %50 = tpu.iota {dimensions = array<i32: 0>} : vector<8x1xi32>
      %c3_i32 = arith.constant 3 : i32
      %51 = vector.broadcast %c3_i32 : i32 to vector<8x1xi32>
      %52 = arith.cmpi slt, %50, %51 : vector<8x1xi32>
      %cst_23 = arith.constant 0.000000e+00 : f32
      %53 = vector.shape_cast %52 : vector<8x1xi1> to vector<8x1xi1>
      %54 = vector.broadcast %53 : vector<8x1xi1> to vector<8x32xi1>
      %55 = vector.broadcast %cst_23 : f32 to vector<8x32xf32>
      %56 = arith.select %54, %44, %55 : vector<8x32xi1>, vector<8x32xf32>
      %cst_24 = arith.constant 0.000000e+00 : f32
      %57 = vector.shape_cast %52 : vector<8x1xi1> to vector<8x1xi1>
      %58 = vector.broadcast %57 : vector<8x1xi1> to vector<8x32xi1>
      %59 = vector.broadcast %cst_24 : f32 to vector<8x32xf32>
      %60 = arith.select %58, %49, %59 : vector<8x32xi1>, vector<8x32xf32>
      %61 = tpu.concatenate %56, %60 in 1 : vector<8x32xf32>, vector<8x32xf32> -> vector<8x64xf32>
      %c0_25 = arith.constant 0 : index
      %c0_26 = arith.constant 0 : index
      %62 = vector.load %arg7[%c0_25, %c0_26] : memref<8x64xf32, #tpu.memory_space<vmem>>, vector<8x64xf32>
      tpu.vector_store %arg7[%c0_25, %c0_26], %61 {strides = array<i32>} : memref<8x64xf32, #tpu.memory_space<vmem>>, vector<8x64xf32>,
    } else {
    }
    return
  }
  func.func @transform_0(%arg0: i32) -> (i32, i32) {
    %c0_i32 = arith.constant 0 : i32
    %c0_i32_0 = arith.constant 0 : i32
    return %c0_i32, %arg0 : i32, i32
  }
  func.func @transform_1(%arg0: i32) -> (i32, i32) {
    %c0_i32 = arith.constant 0 : i32
    %c0_i32_0 = arith.constant 0 : i32
    return %arg0, %c0_i32 : i32, i32
  }
  func.func @transform_2(%arg0: i32) -> (i32, i32) {
    %c0_i32 = arith.constant 0 : i32
    %c0_i32_0 = arith.constant 0 : i32
    %c0_i32_1 = arith.constant 0 : i32
    return %c0_i32, %c0_i32_0 : i32, i32
  }
  func.func @transform_3(%arg0: i32) -> (i32, i32) {
    %c0_i32 = arith.constant 0 : i32
    %c0_i32_0 = arith.constant 0 : i32
    %c0_i32_1 = arith.constant 0 : i32
    return %c0_i32, %c0_i32_0 : i32, i32
  }
  func.func @transform_4(%arg0: i32) -> (i32, i32) {
    %c0_i32 = arith.constant 0 : i32
    %c0_i32_0 = arith.constant 0 : i32
    %c0_i32_1 = arith.constant 0 : i32
    return %c0_i32, %c0_i32_0 : i32, i32
  }
  func.func @transform_5(%arg0: i32) -> (i32, i32) {
    %c0_i32 = arith.constant 0 : i32
    %c0_i32_0 = arith.constant 0 : i32
    %c0_i32_1 = arith.constant 0 : i32
    return %c0_i32, %c0_i32_0 : i32, i32
  }
  func.func @transform_6(%arg0: i32) -> (i32, i32) {
    %c0_i32 = arith.constant 0 : i32
    %c0_i32_0 = arith.constant 0 : i32
    %c0_i32_1 = arith.constant 0 : i32
    return %c0_i32, %c0_i32_0 : i32, i32
  }
}

</mosaic_0001>

<llo_original>
// kernel: tpu_custom_call.1
$region0: #{tpu_custom_call.1}
  #allocation0 [shape = 'u32[]', space=smem, size = 0x4, offset = 0x4, fixed_abs, tag = 'smem constant byte address 0x4 - core index']
  #allocation1 [shape = 'u32[72,128]{1,0:T(1,128)}', space=vmem, size = 0x9000, scoped, tag = 'internal scratch']
  #allocation2 [shape = 'f32[8,64]{1,0:T(8,128)}', space=vmem, size = 0x1000, scoped, tag = 'scratch operand']
  %s0 = inlined_call_operand.vmem [shape: s32[1,16], index: 0, kind: input, shape index: {}]
  %s1 = inlined_call_operand.hbm [shape: f32[16,32], index: 1, kind: input, shape index: {}]
  %s2 = inlined_call_operand.vmem [shape: f32[8,1], index: 2, kind: input, shape index: {}]
  %s3 = inlined_call_operand.vmem [shape: f32[1,32], index: 3, kind: input, shape index: {}]
  %s4 = inlined_call_operand.vmem [shape: f32[1,32], index: 4, kind: input, shape index: {}]
  %s5 = inlined_call_operand.vmem [shape: f32[1,32], index: 5, kind: input, shape index: {}]
  %s6 = inlined_call_operand.hbm [shape: f32[8,64], index: 6, kind: output, shape index: {}]
  %s7 = sld [smem:[#allocation0]]
  $region46: #{tpu_custom_call.1} parent=0
    _
  %s9 = ssub.s32 1, %s7
  %s10 = scalar_select 0, %s9, %s7
  $region1: #{tpu_custom_call.1} parent=0
    #allocation3 [shape = 'u8[8192]{0}', space=vmem, size = 0x2000, scoped, tag = 'input window, operand 1, single buffered']
    #allocation4 [shape = 's32[1]{0}', space=sflag, size = 0x4, scoped, tag = 'scoped memory for tpu_custom_call.1']
    #allocation5 [shape = 's32[1]{0}', space=sflag, size = 0x4, scoped, tag = 'scoped memory for tpu_custom_call.1']
    #allocation6 [shape = 'u8[4096]{0}', space=vmem, size = 0x1000, scoped, tag = 'output window, operand 0, single buffered']
    %11 = vsyncpa [#allocation4], 0
    %12 = vsyncpa [#allocation5], 0
    // Predicated region
    $region2: #{tpu_custom_call.1} parent=1 // pred_check
      _
    $region3: #{tpu_custom_call.1} parent=1 // pred_check_branch
      %14 = sbr.rel (0) target = $region5
    $region4: #{tpu_custom_call.1} parent=1 // pred_region
      _
    $region5: #{tpu_custom_call.1} parent=1 // pred_fallthru
      _
    // Predicated region
    $region6: #{tpu_custom_call.1} parent=1 // pred_check
      _
    $region7: #{tpu_custom_call.1} parent=1 // pred_check_branch
      %16 = sbr.rel (0) target = $region9
    $region8: #{tpu_custom_call.1} parent=1 // pred_region
      %18 = vsyncadd [#allocation4], 0
      %s19 = sshll.u32 %s1, 4
      %s20 = int_to_ptr.hbm [resolvable:$true] %s19
      %s21 = sshll.u32 [#allocation3], 4
      %s22 = int_to_ptr.vmem [resolvable:$true] %s21
      %27 = dma.hbm_to_vmem [thread:$0]  %s20, 256, %s22, [#allocation4], 128, 128, 8
    $region9: #{tpu_custom_call.1} parent=1 // pred_fallthru
      _
    // Predicated region
    $region10: #{tpu_custom_call.1} parent=1 // pred_check
      _
    $region11: #{tpu_custom_call.1} parent=1 // pred_check_branch
      %29 = sbr.rel (0) target = $region13
    $region12: #{tpu_custom_call.1} parent=1 // pred_region
      _
    $region13: #{tpu_custom_call.1} parent=1 // pred_fallthru
      _
    // Predicated region
    $region14: #{tpu_custom_call.1} parent=1 // pred_check
      _
    $region15: #{tpu_custom_call.1} parent=1 // pred_check_branch
      %31 = sbr.rel (0) target = $region17
    $region16: #{tpu_custom_call.1} parent=1 // pred_region
      _
    $region17: #{tpu_custom_call.1} parent=1 // pred_fallthru
      _
    // Predicated region
    $region18: #{tpu_custom_call.1} parent=1 // pred_check
      _
    $region19: #{tpu_custom_call.1} parent=1 // pred_check_branch
      %33 = sbr.rel (0) target = $region21
    $region20: #{tpu_custom_call.1} parent=1 // pred_region
      _
    $region21: #{tpu_custom_call.1} parent=1 // pred_fallthru
      _
    // Predicated region
    $region22: #{tpu_custom_call.1} parent=1 // pred_check
      _
    $region23: #{tpu_custom_call.1} parent=1 // pred_check_branch
      %35 = sbr.rel (0) target = $region25
    $region24: #{tpu_custom_call.1} parent=1 // pred_region
      _
    $region25: #{tpu_custom_call.1} parent=1 // pred_fallthru
      _
    // Predicated region
    $region26: #{tpu_custom_call.1} parent=1 // pred_check
      _
    $region27: #{tpu_custom_call.1} parent=1 // pred_check_branch
      %37 = sbr.rel (0) target = $region29
    $region28: #{tpu_custom_call.1} parent=1 // pred_region
      %39 = dma.done [#allocation4], 256
    $region29: #{tpu_custom_call.1} parent=1 // pred_fallthru
      _
    %p40 = scmp.eq.s32.totalorder 0, 0
    // Predicated region
    $region30: #{tpu_custom_call.1} parent=1 // pred_check
      %p41 = pneg %p40
    $region31: #{tpu_custom_call.1} parent=1 // pred_check_branch
      %43 = sbr.rel (%p41) target = $region33
    $region32: #{tpu_custom_call.1} parent=1 // pred_region
      %vm44 = vcmask 523264
      %45 = vst.msk [vmem:[#allocation2] sm:$0xff] %vm44, 0.0
    $region33: #{tpu_custom_call.1} parent=1 // pred_fallthru
      _
    %v46 = vld [vmem:[#allocation3] sm:$0xff]
    %v47 = vld [vmem:[#allocation3 + $0x8] sm:$0xff]
    %v48 = vmul.f32 %v46, %v46
    %v49 = vmul.f32 %v47, %v47
    %52 = vrot.lane.b32.xlu0 %v48, 32
    %v53 = vpop.permute.xlu0 %52
    %54 = vrot.lane.b32.xlu0 %v49, 32
    %v55 = vpop.permute.xlu0 %54
    %vm58 = vcmask 261120
    %v59 = vsel %vm58, %v46, %v53
    %v60 = vsel %vm58, %v47, %v55
    %v61 = vld [vmem:[%s0] sm:$0x1]
    %v62 = vlaneseq
    %v63 = vshrl.u32 %v62, 7
    %v64 = vperm.slane %v61, 0
    %vm65 = vcmp.eq.s32.totalorder %v63, %v64
    %v66 = vsel %vm65, 1, 0
    %v67 = vcvt.s32.f32 %v66
    %v68 = vld [vmem:[#allocation2] sm:$0xff]
    %vm69 = vcmask 130048
    %v71 = vsel %vm69, %v67, 0
    %73 = vmatpush.msra.mxu0 0.0
    %74 = vmatpush.msra.mxu0 0.0
    %75 = vmatpush.msra.mxu0 0.0
    %76 = vmatpush.msra.mxu0 0.0
    %77 = vmatpush.msra.mxu0 0.0
    %78 = vmatpush.msra.mxu0 0.0
    %79 = vmatpush.msra.mxu0 0.0
    %80 = vmatpush.msra.mxu0 0.0
    %81 = vmatpush.msra.mxu0 0.0
    %82 = vmatpush.msra.mxu0 0.0
    %83 = vmatpush.msra.mxu0 0.0
    %84 = vmatpush.msra.mxu0 0.0
    %85 = vmatpush.msra.mxu0 0.0
    %86 = vmatpush.msra.mxu0 0.0
    %87 = vmatpush.msra.mxu0 %v60
    %88 = vmatpush.msra.mxu0 %v59
    %89 = vmatmul.f32.gmra.mxu0 %v71
    %v90 = vpop.f32.mrf.mxu0
    %v91 = vadd.f32 0.0, %v90
    %92 = vdwg.mxu0
    %v93 = vadd.f32 %v68, %v91
    %vm94 = vcmask 523264
    %95 = vst.msk [vmem:[#allocation2] sm:$0xff] %vm94, %v93
    // Predicated region
    $region34: #{tpu_custom_call.1} parent=1 // pred_check
      %p96 = pneg %p40
    $region35: #{tpu_custom_call.1} parent=1 // pred_check_branch
      %98 = sbr.rel (%p96) target = $region37
    $region36: #{tpu_custom_call.1} parent=1 // pred_region
      %v99 = vld [vmem:[#allocation2] sm:$0xff]
      %v100 = vld [vmem:[%s2] sm:$0xff]
      %102 = vset.pattern.permute.xlu0 0
      %103 = vperm.xlu0 %102, %v100
      %v104 = vpop.permute.xlu0 %103
      %v106 = vmul.f32 %v99, %v104
      %v107 = vld [vmem:[%s3] sm:$0x1]
      %v108 = vld [vmem:[%s4] sm:$0x1]
      %v109 = vld [vmem:[%s5] sm:$0x1]
      %v110 = vmul.f32 %v107, 2.0
      %v111 = vmul.f32 %v107, %v107
      %v112 = vsub.f32 %v110, %v111
      %v113 = vmul.f32 %v106, %v106
      %v115 = vperm.slane %v112, 0
      %v117 = vmul.f32 %v115, %v113
      %119 = vrot.lane.b32.xlu0 %v117, 32
      %v120 = vpop.permute.xlu0 %119
      %v122 = vsub.f32 %v106, %v120
      %v123 = vmax.f32 %v122, 0.0
      %v124 = vadd.f32 %v123, 1e-06
      %v125 = vrsqrt.pop %v124
      %v126 = vmul.f32 %v125, %v124
      %v127 = vmul.f32 %v126, %v125
      %v128 = vmul.f32 0.5, %v127
      %v129 = vsub.f32 1.5, %v128
      %v130 = vmul.f32 %v125, %v129
      %vm131 = vweird.f32 %v124
      %vm132 = vweird.f32 %v125
      %vm133 = vmor %vm131, %vm132
      %v134 = vsel %vm133, %v125, %v130
      %v136 = vperm.slane %v108, 0
      %139 = vrot.lane.b32.xlu0 %v134, 96
      %v140 = vpop.permute.xlu0 %139
      %v142 = vmul.f32 %v136, %v140
      %v144 = vperm.slane %v107, 0
      %v146 = vmul.f32 %v106, %v144
      %v147 = vmul.f32 %v146, %v142
      %v149 = vperm.slane %v109, 0
      %v151 = vsub.f32 %v149, %v147
      %vm152 = vcmp.lt.s32.totalorder %v63, 3
      %v153 = vsel %vm152, 1, 0
      %vm154 = vcmp.eq.s32.totalorder %v153, 1
      %v155 = vsel %vm154, %v142, 0.0
      %v156 = vsel %vm154, %v151, 0.0
      %158 = vrot.lane.b32.xlu0 %v156, 32
      %v159 = vpop.permute.xlu0 %158
      %v161 = vsel %vm58, %v155, %v159
      %162 = vst.msk [vmem:[#allocation6] sm:$0xff] %vm94, %v161
    $region37: #{tpu_custom_call.1} parent=1 // pred_fallthru
      _
    // Predicated region
    $region38: #{tpu_custom_call.1} parent=1 // pred_check
      _
    $region39: #{tpu_custom_call.1} parent=1 // pred_check_branch
      %164 = sbr.rel (0) target = $region41
    $region40: #{tpu_custom_call.1} parent=1 // pred_region
      %166 = vsyncadd [#allocation5], 0
      %s168 = sshll.u32 [#allocation6], 4
      %s169 = int_to_ptr.vmem [resolvable:$true] %s168
      %s170 = sshll.u32 %s6, 4
      %s171 = int_to_ptr.hbm [resolvable:$true] %s170
      %173 = dma.vmem_to_hbm [thread:$0]  %s169, 128, %s171, [#allocation5]
    $region41: #{tpu_custom_call.1} parent=1 // pred_fallthru
      _
    // Predicated region
    $region42: #{tpu_custom_call.1} parent=1 // pred_check
      _
    $region43: #{tpu_custom_call.1} parent=1 // pred_check_branch
      %175 = sbr.rel (0) target = $region45
    $region44: #{tpu_custom_call.1} parent=1 // pred_region
      %177 = dma.done [#allocation5], 128
    $region45: #{tpu_custom_call.1} parent=1 // pred_fallthru
      _
    %178 = vsyncpa [#allocation4], 1
    %179 = vsyncpa [#allocation5], 1

</llo_original>
